<compile_context>
chip_gen: v7x
topology: tpu7x:2x2x1
jax: 0.10.0
libtpu: 0.0.40
codegen_flags: <defaults>
</compile_context>

<pallas_src>
import functools

import numpy as np
import jax
import jax.numpy as jnp
from jax.experimental import pallas as pl
from jax.experimental.pallas import tpu as pltpu

_LANES = 128
_MAX_TILE_ROWS = 2048      # 2048 x 128 x 4B = 1 MiB per f32 block


# ---------------------------------------------------------------------------
# Kernel
# ---------------------------------------------------------------------------

def _make_depth_adjust_kernel(num_pieces, boundaries):
    lb = [float(boundaries[i]) for i in range(num_pieces)]
    hi = float(boundaries[num_pieces])

    def kernel(scales_ref, shifts_ref, d_ref, o_ref):
        # Load in native dtype, do the math in f32.
        d = d_ref[...].astype(jnp.float32)               # (tile_rows, 128)

        # Per-lane coefficient selection: boundaries are sorted, so the piece
        # owning d is the last one whose lower bound d has passed.  One
        # compare per piece, reused for both the scale and the shift select.
        s = jnp.zeros_like(d)
        t = jnp.zeros_like(d)
        in_range = None
        for i in range(num_pieces):                      # unrolled (static)
            cond = d >= lb[i]
            if i == 0:
                in_range = cond                          # reuse for final mask
            s = jnp.where(cond, scales_ref[i], s)
            t = jnp.where(cond, shifts_ref[i], t)

        # Single fused evaluation + range mask.  d < lb[0], d >= hi and NaN
        # all map to 0, exactly matching the PyTorch sum-of-masked-pieces.
        out = jnp.where(in_range & (d < hi), s * d + t, 0.0)
        o_ref[...] = out.astype(o_ref.dtype)

    return kernel


# ---------------------------------------------------------------------------
# Tiling helper
# ---------------------------------------------------------------------------

def _cdiv(a, b):
    return -(-a // b)


def _pick_tile_rows(rows, dtype):
    # (8,128) tiling for 32-bit dtypes, (16,128) for 16-bit packed dtypes.
    min_rows = 16 if jnp.dtype(dtype).itemsize == 2 else 8
    if rows <= min_rows:
        return rows                       # single full-array block (legal)

    # Largest power-of-two tile <= _MAX_TILE_ROWS that does not exceed rows.
    tr = _MAX_TILE_ROWS
    while tr > min_rows and tr > rows:
        tr //= 2

    # v7x shards the "parallel" grid axis across its 2 TensorCores: prefer an
    # even step count when the block stays comfortably large (harmless noise
    # on single-TC v5e/v6e since it only triggers for multi-step grids).
    steps = _cdiv(rows, tr)
    if steps > 1 and steps % 2 == 1 and tr // 2 >= max(min_rows, 512):
        if _cdiv(rows, tr // 2) % 2 == 0:
            tr //= 2
    return tr


# ---------------------------------------------------------------------------
# Wrapper
# ---------------------------------------------------------------------------

@functools.partial(jax.jit, static_argnames=("num_pieces",))
def depth_adjustment_pallas(depth_pred, scales, shifts, num_pieces=8):
    """Piecewise-linear depth transform, fused into a single Pallas kernel."""
    boundaries = np.linspace(1.0, 80.0, num_pieces + 1).astype(np.float32)

    orig_shape = depth_pred.shape
    dtype = depth_pred.dtype

    flat = depth_pred.reshape(-1)                       # no dtype cast (native I/O)
    total = int(flat.shape[0])

    # Pad only a <128-element tail; typical depth maps (H*W mult. of 128) skip
    # this entirely, so no extra full-array HBM pass.
    rem = total % _LANES
    if rem:
        flat = jnp.pad(flat, (0, _LANES - rem))         # pad value 0 -> maps to 0
    rows = int(flat.shape[0]) // _LANES
    x2d = flat.reshape(rows, _LANES)                    # lane-dense slab, free reshape

    tile_rows = _pick_tile_rows(rows, dtype)
    grid = (pl.cdiv(rows, tile_rows),)                  # partial edge block handled by Pallas

    kernel = _make_depth_adjust_kernel(num_pieces, boundaries)

    itemsize = jnp.dtype(dtype).itemsize
    cost = pl.CostEstimate(
        flops=30 * total,
        transcendentals=0,
        bytes_accessed=2 * total * itemsize + 2 * num_pieces * 4,
    )

    out2d = pl.pallas_call(
        kernel,
        out_shape=jax.ShapeDtypeStruct((rows, _LANES), dtype),
        grid=grid,
        in_specs=[
            pl.BlockSpec(memory_space=pltpu.MemorySpace.SMEM),   # scales (num_pieces,)
            pl.BlockSpec(memory_space=pltpu.MemorySpace.SMEM),   # shifts (num_pieces,)
            pl.BlockSpec((tile_rows, _LANES), lambda i: (i, 0)),
        ],
        out_specs=pl.BlockSpec((tile_rows, _LANES), lambda i: (i, 0)),
        compiler_params=pltpu.CompilerParams(
            dimension_semantics=("parallel",)),
        cost_estimate=cost,
    )(scales.astype(jnp.float32), shifts.astype(jnp.float32), x2d)

    out = out2d.reshape(-1)
    if rem:
        out = out[:total]
    return out.reshape(orig_shape)


# ---------------------------------------------------------------------------
# Module
# ---------------------------------------------------------------------------

class DepthAdjustmentPallas:
    """JAX/Pallas counterpart of the PyTorch DepthAdjustment module."""

    def __init__(self, num_pieces=8, epsilon=0.001):
        self.num_pieces = num_pieces
        self.epsilon = epsilon  # present in the PyTorch module but unused in forward
        self.scales = jnp.linspace(1.0, 0.6, num_pieces, dtype=jnp.float32)
        self.shifts = jnp.zeros((num_pieces,), jnp.float32)

    def forward(self, depth_pred):
        return depth_adjustment_pallas(depth_pred, self.scales, self.shifts,
                                       num_pieces=self.num_pieces)


# ---------------------------------------------------------------------------

if __name__ == "__main__":
    key = jax.random.PRNGKey(0)
    k_depth, k_shift = jax.random.split(key, 2)

    # Small shapes: (b, n_cams, H, W) -> 2048 elems = 16 lane-dense rows of 128.
    b, n, H, W = 2, 4, 16, 16
    depth_pred = jax.random.uniform(k_depth, (b, n, H, W), jnp.float32,
                                    minval=0.0, maxval=90.0)

    model = DepthAdjustmentPallas(num_pieces=8)
    # Learnable parameters; perturb shifts so the shift path is actually tested.
    model.shifts = 0.1 * jax.random.normal(k_shift, (model.num_pieces,), jnp.float32)

    out = model.forward(depth_pred)
    jax.block_until_ready(out)

    # Pure-JAX reference (mirrors the PyTorch loop exactly).
    boundaries = np.linspace(1.0, 80.0, model.num_pieces + 1).astype(np.float32)
    ref = jnp.zeros_like(depth_pred)
    for i in range(model.num_pieces):
        mask = (depth_pred >= boundaries[i]) & (depth_pred < boundaries[i + 1])
        ref = ref + jnp.where(mask,
                              model.scales[i] * depth_pred + model.shifts[i],
                              jnp.zeros_like(depth_pred))

    assert out.shape == depth_pred.shape
    assert out.dtype == depth_pred.dtype
    assert jnp.allclose(out, ref, atol=1e-5, rtol=1e-5)
    print("KERNEL_OK")
</pallas_src>

<mosaic_0001>
module attributes {stable_mosaic.version = 11 : i64} {
  func.func @kernel(%arg0: i32, %arg1: memref<8xf32, #tpu.memory_space<smem>>, %arg2: memref<8xf32, #tpu.memory_space<smem>>, %arg3: memref<16x128xf32, #tpu.memory_space<vmem>>, %arg4: memref<16x128xf32, #tpu.memory_space<vmem>>) attributes {dimension_semantics = [#tpu.dimension_semantics<parallel>], iteration_bounds = array<i64: 1>, scalar_prefetch = 0 : i64, scratch_operands = 0 : i64, tpu.core_type = #tpu.core_type<tc>, window_params = [{transform_indices = @transform_0, window_bounds = array<i64: 8>}, {transform_indices = @transform_1, window_bounds = array<i64: 8>}, {transform_indices = @transform_2, window_bounds = array<i64: 16, 128>}, {transform_indices = @transform_3, window_bounds = array<i64: 16, 128>}]} {
    %c0 = arith.constant 0 : index
    %c0_0 = arith.constant 0 : index
    %0 = vector.load %arg3[%c0, %c0_0] : memref<16x128xf32, #tpu.memory_space<vmem>>, vector<16x128xf32>
    %cst = arith.constant 0.000000e+00 : f32
    %1 = vector.broadcast %cst : f32 to vector<16x128xf32>
    %cst_1 = arith.constant 0.000000e+00 : f32
    %2 = vector.broadcast %cst_1 : f32 to vector<16x128xf32>
    %cst_2 = arith.constant 1.000000e+00 : f32
    %3 = vector.broadcast %cst_2 : f32 to vector<16x128xf32>
    %4 = arith.cmpf oge, %0, %3 : vector<16x128xf32>
    %c0_3 = arith.constant 0 : index
    %5 = memref.load %arg1[%c0_3] : memref<8xf32, #tpu.memory_space<smem>>
    %6 = vector.broadcast %5 : f32 to vector<16x128xf32>
    %7 = arith.select %4, %6, %1 : vector<16x128xi1>, vector<16x128xf32>
    %c0_4 = arith.constant 0 : index
    %8 = memref.load %arg2[%c0_4] : memref<8xf32, #tpu.memory_space<smem>>
    %9 = vector.broadcast %8 : f32 to vector<16x128xf32>
    %10 = arith.select %4, %9, %2 : vector<16x128xi1>, vector<16x128xf32>
    %cst_5 = arith.constant 1.087500e+01 : f32
    %11 = vector.broadcast %cst_5 : f32 to vector<16x128xf32>
    %12 = arith.cmpf oge, %0, %11 : vector<16x128xf32>
    %c1 = arith.constant 1 : index
    %13 = memref.load %arg1[%c1] : memref<8xf32, #tpu.memory_space<smem>>
    %14 = vector.broadcast %13 : f32 to vector<16x128xf32>
    %15 = arith.select %12, %14, %7 : vector<16x128xi1>, vector<16x128xf32>
    %c1_6 = arith.constant 1 : index
    %16 = memref.load %arg2[%c1_6] : memref<8xf32, #tpu.memory_space<smem>>
    %17 = vector.broadcast %16 : f32 to vector<16x128xf32>
    %18 = arith.select %12, %17, %10 : vector<16x128xi1>, vector<16x128xf32>
    %cst_7 = arith.constant 2.075000e+01 : f32
    %19 = vector.broadcast %cst_7 : f32 to vector<16x128xf32>
    %20 = arith.cmpf oge, %0, %19 : vector<16x128xf32>
    %c2 = arith.constant 2 : index
    %21 = memref.load %arg1[%c2] : memref<8xf32, #tpu.memory_space<smem>>
    %22 = vector.broadcast %21 : f32 to vector<16x128xf32>
    %23 = arith.select %20, %22, %15 : vector<16x128xi1>, vector<16x128xf32>
    %c2_8 = arith.constant 2 : index
    %24 = memref.load %arg2[%c2_8] : memref<8xf32, #tpu.memory_space<smem>>
    %25 = vector.broadcast %24 : f32 to vector<16x128xf32>
    %26 = arith.select %20, %25, %18 : vector<16x128xi1>, vector<16x128xf32>
    %cst_9 = arith.constant 3.062500e+01 : f32
    %27 = vector.broadcast %cst_9 : f32 to vector<16x128xf32>
    %28 = arith.cmpf oge, %0, %27 : vector<16x128xf32>
    %c3 = arith.constant 3 : index
    %29 = memref.load %arg1[%c3] : memref<8xf32, #tpu.memory_space<smem>>
    %30 = vector.broadcast %29 : f32 to vector<16x128xf32>
    %31 = arith.select %28, %30, %23 : vector<16x128xi1>, vector<16x128xf32>
    %c3_10 = arith.constant 3 : index
    %32 = memref.load %arg2[%c3_10] : memref<8xf32, #tpu.memory_space<smem>>
    %33 = vector.broadcast %32 : f32 to vector<16x128xf32>
    %34 = arith.select %28, %33, %26 : vector<16x128xi1>, vector<16x128xf32>
    %cst_11 = arith.constant 4.050000e+01 : f32
    %35 = vector.broadcast %cst_11 : f32 to vector<16x128xf32>
    %36 = arith.cmpf oge, %0, %35 : vector<16x128xf32>
    %c4 = arith.constant 4 : index
    %37 = memref.load %arg1[%c4] : memref<8xf32, #tpu.memory_space<smem>>
    %38 = vector.broadcast %37 : f32 to vector<16x128xf32>
    %39 = arith.select %36, %38, %31 : vector<16x128xi1>, vector<16x128xf32>
    %c4_12 = arith.constant 4 : index
    %40 = memref.load %arg2[%c4_12] : memref<8xf32, #tpu.memory_space<smem>>
    %41 = vector.broadcast %40 : f32 to vector<16x128xf32>
    %42 = arith.select %36, %41, %34 : vector<16x128xi1>, vector<16x128xf32>
    %cst_13 = arith.constant 5.037500e+01 : f32
    %43 = vector.broadcast %cst_13 : f32 to vector<16x128xf32>
    %44 = arith.cmpf oge, %0, %43 : vector<16x128xf32>
    %c5 = arith.constant 5 : index
    %45 = memref.load %arg1[%c5] : memref<8xf32, #tpu.memory_space<smem>>
    %46 = vector.broadcast %45 : f32 to vector<16x128xf32>
    %47 = arith.select %44, %46, %39 : vector<16x128xi1>, vector<16x128xf32>
    %c5_14 = arith.constant 5 : index
    %48 = memref.load %arg2[%c5_14] : memref<8xf32, #tpu.memory_space<smem>>
    %49 = vector.broadcast %48 : f32 to vector<16x128xf32>
    %50 = arith.select %44, %49, %42 : vector<16x128xi1>, vector<16x128xf32>
    %cst_15 = arith.constant 6.025000e+01 : f32
    %51 = vector.broadcast %cst_15 : f32 to vector<16x128xf32>
    %52 = arith.cmpf oge, %0, %51 : vector<16x128xf32>
    %c6 = arith.constant 6 : index
    %53 = memref.load %arg1[%c6] : memref<8xf32, #tpu.memory_space<smem>>
    %54 = vector.broadcast %53 : f32 to vector<16x128xf32>
    %55 = arith.select %52, %54, %47 : vector<16x128xi1>, vector<16x128xf32>
    %c6_16 = arith.constant 6 : index
    %56 = memref.load %arg2[%c6_16] : memref<8xf32, #tpu.memory_space<smem>>
    %57 = vector.broadcast %56 : f32 to vector<16x128xf32>
    %58 = arith.select %52, %57, %50 : vector<16x128xi1>, vector<16x128xf32>
    %cst_17 = arith.constant 7.012500e+01 : f32
    %59 = vector.broadcast %cst_17 : f32 to vector<16x128xf32>
    %60 = arith.cmpf oge, %0, %59 : vector<16x128xf32>
    %c7 = arith.constant 7 : index
    %61 = memref.load %arg1[%c7] : memref<8xf32, #tpu.memory_space<smem>>
    %62 = vector.broadcast %61 : f32 to vector<16x128xf32>
    %63 = arith.select %60, %62, %55 : vector<16x128xi1>, vector<16x128xf32>
    %c7_18 = arith.constant 7 : index
    %64 = memref.load %arg2[%c7_18] : memref<8xf32, #tpu.memory_space<smem>>
    %65 = vector.broadcast %64 : f32 to vector<16x128xf32>
    %66 = arith.select %60, %65, %58 : vector<16x128xi1>, vector<16x128xf32>
    %cst_19 = arith.constant 8.000000e+01 : f32
    %67 = vector.broadcast %cst_19 : f32 to vector<16x128xf32>
    %68 = arith.cmpf olt, %0, %67 : vector<16x128xf32>
    %69 = arith.andi %4, %68 : vector<16x128xi1>
    %70 = arith.mulf %63, %0 : vector<16x128xf32>
    %71 = arith.addf %70, %66 : vector<16x128xf32>
    %cst_20 = arith.constant 0.000000e+00 : f32
    %72 = vector.broadcast %cst_20 : f32 to vector<16x128xf32>
    %73 = arith.select %69, %71, %72 : vector<16x128xi1>, vector<16x128xf32>
    %c0_21 = arith.constant 0 : index
    %c0_22 = arith.constant 0 : index
    %74 = vector.load %arg4[%c0_21, %c0_22] : memref<16x128xf32, #tpu.memory_space<vmem>>, vector<16x128xf32>
    tpu.vector_store %arg4[%c0_21, %c0_22], %73 {strides = array<i32>} : memref<16x128xf32, #tpu.memory_space<vmem>>, vector<16x128xf32>,
    return
  }
  func.func @transform_0(%arg0: i32) -> i32 {
    %c0_i32 = arith.constant 0 : i32
    %c0_i32_0 = arith.constant 0 : i32
    return %c0_i32 : i32
  }
  func.func @transform_1(%arg0: i32) -> i32 {
    %c0_i32 = arith.constant 0 : i32
    %c0_i32_0 = arith.constant 0 : i32
    return %c0_i32 : i32
  }
  func.func @transform_2(%arg0: i32) -> (i32, i32) {
    %c0_i32 = arith.constant 0 : i32
    %c0_i32_0 = arith.constant 0 : i32
    return %arg0, %c0_i32 : i32, i32
  }
  func.func @transform_3(%arg0: i32) -> (i32, i32) {
    %c0_i32 = arith.constant 0 : i32
    %c0_i32_0 = arith.constant 0 : i32
    return %arg0, %c0_i32 : i32, i32
  }
}

</mosaic_0001>

<llo_original>
// kernel: depth_adjustment_pallas.1
$region0: #{depth_adjustment_pallas.1}
  #allocation0 [shape = 'u32[]', space=smem, size = 0x4, offset = 0x4, fixed_abs, tag = 'smem constant byte address 0x4 - core index']
  #allocation1 [shape = 'u32[144,128]{1,0:T(1,128)}', space=vmem, size = 0x12000, scoped, tag = 'internal scratch']
  %s0 = inlined_call_operand.vmem [shape: f32[8], index: 0, kind: input, shape index: {}]
  %s1 = inlined_call_operand.vmem [shape: f32[8], index: 1, kind: input, shape index: {}]
  %s2 = inlined_call_operand.vmem [shape: f32[16,128], index: 2, kind: input, shape index: {}]
  %s3 = inlined_call_operand.vmem [shape: f32[16,128], index: 3, kind: output, shape index: {}]
  %s4 = sld [smem:[#allocation0]]
  $region30: #{depth_adjustment_pallas.1} parent=0
    _
  %s6 = ssub.s32 1, %s4
  %s7 = scalar_select 0, %s6, %s4
  $region1: #{depth_adjustment_pallas.1} parent=0
    #allocation2 [shape = 'u8[512]{0}', space=smem, size = 0x200, scoped, tag = 'input window, operand 0, single buffered']
    #allocation3 [shape = 's32[1]{0}', space=sflag, size = 0x4, scoped, tag = 'scoped memory for depth_adjustment_pallas.1']
    #allocation4 [shape = 'u8[512]{0}', space=smem, size = 0x200, scoped, tag = 'input window, operand 1, single buffered']
    #allocation5 [shape = 's32[1]{0}', space=sflag, size = 0x4, scoped, tag = 'scoped memory for depth_adjustment_pallas.1']
    %8 = vsyncpa [#allocation3], 0
    %9 = vsyncpa [#allocation5], 0
    // Predicated region
    $region2: #{depth_adjustment_pallas.1} parent=1 // pred_check
      _
    $region3: #{depth_adjustment_pallas.1} parent=1 // pred_check_branch
      %11 = sbr.rel (0) target = $region5
    $region4: #{depth_adjustment_pallas.1} parent=1 // pred_region
      %s13 = ssub.s32 16, 16
      %14 = vsyncadd [#allocation3], %s13
      %s16 = sshll.u32 %s0, 4
      %s17 = int_to_ptr.vmem [resolvable:$true] %s16
      %19 = dma.vmem_to_smem %s17, 16, [#allocation2], [#allocation3]
    $region5: #{depth_adjustment_pallas.1} parent=1 // pred_fallthru
      _
    // Predicated region
    $region6: #{depth_adjustment_pallas.1} parent=1 // pred_check
      _
    $region7: #{depth_adjustment_pallas.1} parent=1 // pred_check_branch
      %21 = sbr.rel (0) target = $region9
    $region8: #{depth_adjustment_pallas.1} parent=1 // pred_region
      %s23 = ssub.s32 16, 16
      %24 = vsyncadd [#allocation5], %s23
      %s26 = sshll.u32 %s1, 4
      %s27 = int_to_ptr.vmem [resolvable:$true] %s26
      %29 = dma.vmem_to_smem %s27, 16, [#allocation4], [#allocation5]
    $region9: #{depth_adjustment_pallas.1} parent=1 // pred_fallthru
      _
    // Predicated region
    $region10: #{depth_adjustment_pallas.1} parent=1 // pred_check
      _
    $region11: #{depth_adjustment_pallas.1} parent=1 // pred_check_branch
      %31 = sbr.rel (0) target = $region13
    $region12: #{depth_adjustment_pallas.1} parent=1 // pred_region
      _
    $region13: #{depth_adjustment_pallas.1} parent=1 // pred_fallthru
      _
    // Predicated region
    $region14: #{depth_adjustment_pallas.1} parent=1 // pred_check
      _
    $region15: #{depth_adjustment_pallas.1} parent=1 // pred_check_branch
      %33 = sbr.rel (0) target = $region17
    $region16: #{depth_adjustment_pallas.1} parent=1 // pred_region
      %34 = dma.done [#allocation3], 16
    $region17: #{depth_adjustment_pallas.1} parent=1 // pred_fallthru
      _
    // Predicated region
    $region18: #{depth_adjustment_pallas.1} parent=1 // pred_check
      _
    $region19: #{depth_adjustment_pallas.1} parent=1 // pred_check_branch
      %36 = sbr.rel (0) target = $region21
    $region20: #{depth_adjustment_pallas.1} parent=1 // pred_region
      %37 = dma.done [#allocation5], 16
    $region21: #{depth_adjustment_pallas.1} parent=1 // pred_fallthru
      _
    %38 = sfence
    %v39 = vld [vmem:[%s2] sm:$0xff]
    %v40 = vld [vmem:[%s2 + $0x8] sm:$0xff]
    %vm41 = vcmp.ge.f32.partialorder %v39, 1.0
    %vm42 = vcmp.ge.f32.partialorder %v40, 1.0
    %s43 = sld [smem:[#allocation2]]
    %v44 = vstv %s43
    %v45 = vsel %vm41, %v44, 0.0
    %v46 = vsel %vm42, %v44, 0.0
    %s47 = sld [smem:[#allocation4]]
    %v48 = vstv %s47
    %v49 = vsel %vm41, %v48, 0.0
    %v50 = vsel %vm42, %v48, 0.0
    %vm51 = vcmp.ge.f32.partialorder %v39, 10.875
    %vm52 = vcmp.ge.f32.partialorder %v40, 10.875
    %s53 = sld [smem:[#allocation2 + $0x1]]
    %v54 = vstv %s53
    %v55 = vsel %vm51, %v54, %v45
    %v56 = vsel %vm52, %v54, %v46
    %s57 = sld [smem:[#allocation4 + $0x1]]
    %v58 = vstv %s57
    %v59 = vsel %vm51, %v58, %v49
    %v60 = vsel %vm52, %v58, %v50
    %vm61 = vcmp.ge.f32.partialorder %v39, 20.75
    %vm62 = vcmp.ge.f32.partialorder %v40, 20.75
    %s63 = sld [smem:[#allocation2 + $0x2]]
    %v64 = vstv %s63
    %v65 = vsel %vm61, %v64, %v55
    %v66 = vsel %vm62, %v64, %v56
    %s67 = sld [smem:[#allocation4 + $0x2]]
    %v68 = vstv %s67
    %v69 = vsel %vm61, %v68, %v59
    %v70 = vsel %vm62, %v68, %v60
    %vm71 = vcmp.ge.f32.partialorder %v39, 30.625
    %vm72 = vcmp.ge.f32.partialorder %v40, 30.625
    %s73 = sld [smem:[#allocation2 + $0x3]]
    %v74 = vstv %s73
    %v75 = vsel %vm71, %v74, %v65
    %v76 = vsel %vm72, %v74, %v66
    %s77 = sld [smem:[#allocation4 + $0x3]]
    %v78 = vstv %s77
    %v79 = vsel %vm71, %v78, %v69
    %v80 = vsel %vm72, %v78, %v70
    %vm81 = vcmp.ge.f32.partialorder %v39, 40.5
    %vm82 = vcmp.ge.f32.partialorder %v40, 40.5
    %s83 = sld [smem:[#allocation2 + $0x4]]
    %v84 = vstv %s83
    %v85 = vsel %vm81, %v84, %v75
    %v86 = vsel %vm82, %v84, %v76
    %s87 = sld [smem:[#allocation4 + $0x4]]
    %v88 = vstv %s87
    %v89 = vsel %vm81, %v88, %v79
    %v90 = vsel %vm82, %v88, %v80
    %vm91 = vcmp.ge.f32.partialorder %v39, 50.375
    %vm92 = vcmp.ge.f32.partialorder %v40, 50.375
    %s93 = sld [smem:[#allocation2 + $0x5]]
    %v94 = vstv %s93
    %v95 = vsel %vm91, %v94, %v85
    %v96 = vsel %vm92, %v94, %v86
    %s97 = sld [smem:[#allocation4 + $0x5]]
    %v98 = vstv %s97
    %v99 = vsel %vm91, %v98, %v89
    %v100 = vsel %vm92, %v98, %v90
    %vm101 = vcmp.ge.f32.partialorder %v39, 60.25
    %vm102 = vcmp.ge.f32.partialorder %v40, 60.25
    %s103 = sld [smem:[#allocation2 + $0x6]]
    %v104 = vstv %s103
    %v105 = vsel %vm101, %v104, %v95
    %v106 = vsel %vm102, %v104, %v96
    %s107 = sld [smem:[#allocation4 + $0x6]]
    %v108 = vstv %s107
    %v109 = vsel %vm101, %v108, %v99
    %v110 = vsel %vm102, %v108, %v100
    %vm111 = vcmp.ge.f32.partialorder %v39, 70.125
    %vm112 = vcmp.ge.f32.partialorder %v40, 70.125
    %s113 = sld [smem:[#allocation2 + $0x7]]
    %v114 = vstv %s113
    %v115 = vsel %vm111, %v114, %v105
    %v116 = vsel %vm112, %v114, %v106
    %s117 = sld [smem:[#allocation4 + $0x7]]
    %v118 = vstv %s117
    %v119 = vsel %vm111, %v118, %v109
    %v120 = vsel %vm112, %v118, %v110
    %vm121 = vcmp.lt.f32.partialorder %v39, 80.0
    %vm122 = vcmp.lt.f32.partialorder %v40, 80.0
    %vm123 = vmand %vm41, %vm121
    %vm124 = vmand %vm42, %vm122
    %v125 = vmul.f32 %v115, %v39
    %v126 = vmul.f32 %v116, %v40
    %v127 = vadd.f32 %v125, %v119
    %v128 = vadd.f32 %v126, %v120
    %v129 = vsel %vm123, %v127, 0.0
    %v130 = vsel %vm124, %v128, 0.0
    %131 = vst [vmem:[%s3] sm:$0xff] %v129
    %132 = vst [vmem:[%s3 + $0x8] sm:$0xff] %v130
    // Predicated region
    $region22: #{depth_adjustment_pallas.1} parent=1 // pred_check
      _
    $region23: #{depth_adjustment_pallas.1} parent=1 // pred_check_branch
      %134 = sbr.rel (0) target = $region25
    $region24: #{depth_adjustment_pallas.1} parent=1 // pred_region
      _
    $region25: #{depth_adjustment_pallas.1} parent=1 // pred_fallthru
      _
    // Predicated region
    $region26: #{depth_adjustment_pallas.1} parent=1 // pred_check
      _
    $region27: #{depth_adjustment_pallas.1} parent=1 // pred_check_branch
      %136 = sbr.rel (0) target = $region29
    $region28: #{depth_adjustment_pallas.1} parent=1 // pred_region
      _
    $region29: #{depth_adjustment_pallas.1} parent=1 // pred_fallthru
      _
    %137 = vsyncpa [#allocation3], 1
    %138 = vsyncpa [#allocation5], 1

</llo_original>
